<compile_context>
chip_gen: v7x
topology: tpu7x:2x2x1
jax: 0.10.0
libtpu: 0.0.40
codegen_flags: <defaults>
</compile_context>

<pallas_src>
import jax
import jax.numpy as jnp
from jax.experimental import pallas as pl
from jax.experimental.pallas import tpu as pltpu


# ----------------------------- kernel helpers ------------------------------

def _score_softmax(q, e, o_ref, off=None):
    """scores[b, l] = sum_h q[b, h] * e[l, b, h] (+ off[b]); softmax over l."""
    # (L, tB, H) * (1, tB, H) -> lane-reduce over H -> (L, tB); transpose the
    # tiny score matrix instead of transposing the big encoder tensor.
    s = jnp.sum(e * q[None, :, :], axis=-1).T            # (tB, L) f32
    if off is not None:
        s = s + off                                       # per-batch constant
    m = jnp.max(s, axis=-1, keepdims=True)
    p = jnp.exp(s - m)
    denom = jnp.sum(p, axis=-1, keepdims=True)
    o_ref[...] = p * pl.reciprocal(denom, approx=False)


def _dot_kernel(h_ref, e_ref, o_ref):
    _score_softmax(h_ref[...], e_ref[...], o_ref)


def _general_kernel(h_ref, w_ref, b_ref, e_ref, o_ref):
    h = h_ref[...]                                        # (tB, H)
    w = w_ref[...]                                        # (H, H) PyTorch (out,in)
    b = b_ref[...]                                        # (1, H)
    # h . (e W^T + b) == (h W) . e + h . b
    q = jnp.dot(h, w, preferred_element_type=jnp.float32)        # (tB, H)
    off = jnp.sum(h * b, axis=-1, keepdims=True)                  # (tB, 1)
    _score_softmax(q, e_ref[...], o_ref, off)


def _concat_kernel(h_ref, wh_ref, we_ref, b_ref, v_ref, e_ref, o_ref):
    h = h_ref[...]                                        # (tB, H)
    wh = wh_ref[...]                                      # (H, H) = W[:, :H]
    we = we_ref[...]                                      # (H, H) = W[:, H:]
    b = b_ref[...]                                        # (1, H)
    v = v_ref[...]                                        # (1, H)
    # v . (W [h; e] + b) == (v Wh) . h + (v We) . e + v . b   (no tanh in ref)
    u_h = jnp.dot(v, wh, preferred_element_type=jnp.float32)      # (1, H)
    u_e = jnp.dot(v, we, preferred_element_type=jnp.float32)      # (1, H)
    off = (jnp.sum(h * u_h, axis=-1, keepdims=True)
           + jnp.sum(v * b, axis=-1, keepdims=True))               # (tB, 1)
    q = jnp.broadcast_to(u_e, h.shape)                             # (tB, H)
    _score_softmax(q, e_ref[...], o_ref, off)


# ------------------------------ host wrapper -------------------------------

def _pick_batch_tile(B, L, H, budget_bytes=8 << 20):
    """Largest batch tile that divides B, respects the sublane rule (multiple
    of 8 or full B) and keeps the double-buffered encoder block in budget."""
    if B <= 8 or B % 8 != 0:
        return B
    tb = 8
    while (B % (tb * 2) == 0) and 2 * (L * (tb * 2) * H * 4) <= budget_bytes:
        tb *= 2
    return tb


def _const_spec(shape):
    return pl.BlockSpec(shape, lambda b, _n=len(shape): (0,) * _n)


def global_attn(hidden_state, encoder_outputs, params, attn_method):
    """hidden_state (B,H) f32, encoder_outputs (L,B,H) f32 -> (B,L) f32."""
    L, B, H = encoder_outputs.shape
    tb = _pick_batch_tile(B, L, H)
    grid = (B // tb,)

    h_spec = pl.BlockSpec((tb, H), lambda b: (b, 0))
    e_spec = pl.BlockSpec((L, tb, H), lambda b: (0, b, 0))   # native (L,B,H)
    out_spec = pl.BlockSpec((tb, L), lambda b: (b, 0))
    out_shape = jax.ShapeDtypeStruct((B, L), jnp.float32)

    if attn_method == 'dot':
        kernel = _dot_kernel
        inputs = (hidden_state, encoder_outputs)
        in_specs = [h_spec, e_spec]
    elif attn_method == 'general':
        w = params['w']                                   # (H, H)
        b = params['b'].reshape(1, H)
        kernel = _general_kernel
        inputs = (hidden_state, w, b, encoder_outputs)
        in_specs = [h_spec, _const_spec((H, H)), _const_spec((1, H)), e_spec]
    elif attn_method == 'concat':
        w = params['w']                                   # (H, 2H)
        w_h, w_e = w[:, :H], w[:, H:]                     # static param split
        b = params['b'].reshape(1, H)
        v = params['v'].reshape(1, H)
        kernel = _concat_kernel
        inputs = (hidden_state, w_h, w_e, b, v, encoder_outputs)
        in_specs = [h_spec, _const_spec((H, H)), _const_spec((H, H)),
                    _const_spec((1, H)), _const_spec((1, H)), e_spec]
    else:
        raise ValueError(attn_method)

    return pl.pallas_call(
        kernel,
        out_shape=out_shape,
        grid=grid,
        in_specs=in_specs,
        out_specs=out_spec,
        compiler_params=pltpu.CompilerParams(
            dimension_semantics=("parallel",),
            vmem_limit_bytes=32 * 1024 * 1024,
        ),
    )(*inputs)


# ----------------------------- pure-JAX reference --------------------------

def global_attn_ref(hidden_state, encoder_outputs, params, attn_method):
    enc = jnp.transpose(encoder_outputs, (1, 0, 2))       # (B, L, H)
    h = hidden_state
    if attn_method == 'dot':
        scores = jnp.sum(h[:, None, :] * enc, axis=-1)
    elif attn_method == 'general':
        proj = jnp.einsum('blh,kh->blk', enc, params['w']) + params['b']
        scores = jnp.sum(h[:, None, :] * proj, axis=-1)
    elif attn_method == 'concat':
        B, L, H = enc.shape
        cat = jnp.concatenate(
            [jnp.broadcast_to(h[:, None, :], (B, L, H)), enc], axis=-1)
        proj = jnp.einsum('blc,kc->blk', cat, params['w']) + params['b']
        scores = jnp.sum(params['v'].reshape(1, 1, H) * proj, axis=-1)
    return jax.nn.softmax(scores, axis=1)


# ----------------------------------- main -----------------------------------

if __name__ == "__main__":
    B, L, H = 2, 8, 32

    key = jax.random.PRNGKey(0)
    k_h, k_e, k_wg, k_bg, k_wc, k_bc, k_v = jax.random.split(key, 7)

    hidden_state = jax.random.normal(k_h, (B, H), dtype=jnp.float32)
    encoder_outputs = jax.random.normal(k_e, (L, B, H), dtype=jnp.float32)

    # Deterministic parameter init (shapes follow nn.Linear / nn.Parameter).
    params_by_method = {
        'dot': {},
        'general': {
            'w': jax.random.normal(k_wg, (H, H), dtype=jnp.float32) * 0.1,
            'b': jax.random.normal(k_bg, (H,), dtype=jnp.float32) * 0.1,
        },
        'concat': {
            'w': jax.random.normal(k_wc, (H, 2 * H), dtype=jnp.float32) * 0.1,
            'b': jax.random.normal(k_bc, (H,), dtype=jnp.float32) * 0.1,
            'v': jax.random.normal(k_v, (1, H), dtype=jnp.float32),
        },
    }

    ok = True
    for method in ('dot', 'general', 'concat'):
        params = params_by_method[method]
        out = global_attn(hidden_state, encoder_outputs, params, method)
        out = jax.block_until_ready(out)
        ref = global_attn_ref(hidden_state, encoder_outputs, params, method)
        if out.shape != (B, L):
            ok = False
        if not bool(jnp.allclose(out, ref, atol=1e-5, rtol=1e-4)):
            ok = False
        # rows of softmax output must sum to 1
        if not bool(jnp.allclose(jnp.sum(out, axis=1), 1.0, atol=1e-5)):
            ok = False

    print("KERNEL_OK" if ok else "KERNEL_MISMATCH")
</pallas_src>

<mosaic_0001>
module attributes {stable_mosaic.version = 11 : i64} {
  func.func @_dot_kernel(%arg0: i32, %arg1: memref<2x32xf32, #tpu.memory_space<vmem>>, %arg2: memref<8x2x32xf32, #tpu.memory_space<vmem>>, %arg3: memref<2x8xf32, #tpu.memory_space<vmem>>) attributes {dimension_semantics = [#tpu.dimension_semantics<parallel>], iteration_bounds = array<i64: 1>, scalar_prefetch = 0 : i64, scratch_operands = 0 : i64, tpu.core_type = #tpu.core_type<tc>, window_params = [{transform_indices = @transform_0, window_bounds = array<i64: 2, 32>}, {transform_indices = @transform_1, window_bounds = array<i64: 8, 2, 32>}, {transform_indices = @transform_2, window_bounds = array<i64: 2, 8>}]} {
    %c0 = arith.constant 0 : index
    %c0_0 = arith.constant 0 : index
    %0 = vector.load %arg1[%c0, %c0_0] : memref<2x32xf32, #tpu.memory_space<vmem>>, vector<2x32xf32>
    %c0_1 = arith.constant 0 : index
    %c0_2 = arith.constant 0 : index
    %c0_3 = arith.constant 0 : index
    %1 = vector.load %arg2[%c0_1, %c0_2, %c0_3] : memref<8x2x32xf32, #tpu.memory_space<vmem>>, vector<8x2x32xf32>
    %2 = vector.shape_cast %0 : vector<2x32xf32> to vector<1x2x32xf32>
    %3 = vector.broadcast %2 : vector<1x2x32xf32> to vector<8x2x32xf32>
    %4 = arith.mulf %1, %3 : vector<8x2x32xf32>
    %cst = arith.constant dense<0.000000e+00> : vector<8x2xf32>
    %5 = vector.multi_reduction <add>, %4, %cst [2] : vector<8x2x32xf32> to vector<8x2xf32>
    %6 = tpu.transpose %5, [1, 0] : vector<8x2xf32> -> vector<2x8xf32>
    %cst_4 = arith.constant dense<0xFF800000> : vector<2xf32>
    %7 = vector.multi_reduction <maximumf>, %6, %cst_4 [1] : vector<2x8xf32> to vector<2xf32>
    %8 = vector.shape_cast %7 : vector<2xf32> to vector<2x1xf32>
    %9 = vector.broadcast %8 : vector<2x1xf32> to vector<2x8xf32>
    %10 = arith.subf %6, %9 : vector<2x8xf32>
    %11 = math.exp %10 : vector<2x8xf32>
    %cst_5 = arith.constant dense<0.000000e+00> : vector<2xf32>
    %12 = vector.multi_reduction <add>, %11, %cst_5 [1] : vector<2x8xf32> to vector<2xf32>
    %13 = vector.shape_cast %12 : vector<2xf32> to vector<2x1xf32>
    %14 = tpu.reciprocal %13 : vector<2x1xf32> -> vector<2x1xf32>
    %15 = vector.broadcast %14 : vector<2x1xf32> to vector<2x8xf32>
    %16 = arith.mulf %11, %15 : vector<2x8xf32>
    %c0_6 = arith.constant 0 : index
    %c0_7 = arith.constant 0 : index
    %17 = vector.load %arg3[%c0_6, %c0_7] : memref<2x8xf32, #tpu.memory_space<vmem>>, vector<2x8xf32>
    tpu.vector_store %arg3[%c0_6, %c0_7], %16 {strides = array<i32>} : memref<2x8xf32, #tpu.memory_space<vmem>>, vector<2x8xf32>,
    return
  }
  func.func @transform_0(%arg0: i32) -> (i32, i32) {
    %c0_i32 = arith.constant 0 : i32
    %c0_i32_0 = arith.constant 0 : i32
    return %arg0, %c0_i32 : i32, i32
  }
  func.func @transform_1(%arg0: i32) -> (i32, i32, i32) {
    %c0_i32 = arith.constant 0 : i32
    %c0_i32_0 = arith.constant 0 : i32
    %c0_i32_1 = arith.constant 0 : i32
    return %c0_i32, %arg0, %c0_i32_0 : i32, i32, i32
  }
  func.func @transform_2(%arg0: i32) -> (i32, i32) {
    %c0_i32 = arith.constant 0 : i32
    %c0_i32_0 = arith.constant 0 : i32
    return %arg0, %c0_i32 : i32, i32
  }
}

</mosaic_0001>

<llo_original>
// kernel: tpu_custom_call.1
$region0: #{tpu_custom_call.1}
  #allocation0 [shape = 'u32[]', space=smem, size = 0x4, offset = 0x4, fixed_abs, tag = 'smem constant byte address 0x4 - core index']
  #allocation1 [shape = 'u32[144,128]{1,0:T(1,128)}', space=vmem, size = 0x12000, scoped, tag = 'internal scratch']
  %s0 = inlined_call_operand.hbm [shape: f32[2,32], index: 0, kind: input, shape index: {}]
  %s1 = inlined_call_operand.hbm [shape: f32[8,2,32], index: 1, kind: input, shape index: {}]
  %s2 = inlined_call_operand.hbm [shape: f32[2,8], index: 2, kind: output, shape index: {}]
  %s3 = sld [smem:[#allocation0]]
  $region26: #{tpu_custom_call.1} parent=0
    _
  %s5 = ssub.s32 1, %s3
  %s6 = scalar_select 0, %s5, %s3
  $region1: #{tpu_custom_call.1} parent=0
    #allocation2 [shape = 'u8[1024]{0}', space=vmem, size = 0x400, scoped, tag = 'input window, operand 0, single buffered']
    #allocation3 [shape = 's32[1]{0}', space=sflag, size = 0x4, scoped, tag = 'scoped memory for tpu_custom_call.1']
    #allocation4 [shape = 's32[1]{0}', space=sflag, size = 0x4, scoped, tag = 'scoped memory for tpu_custom_call.1']
    #allocation5 [shape = 'u8[8192]{0}', space=vmem, size = 0x2000, scoped, tag = 'input window, operand 1, single buffered']
    #allocation6 [shape = 's32[1]{0}', space=sflag, size = 0x4, scoped, tag = 'scoped memory for tpu_custom_call.1']
    #allocation7 [shape = 'u8[1024]{0}', space=vmem, size = 0x400, scoped, tag = 'output window, operand 0, single buffered']
    %7 = vsyncpa [#allocation3], 0
    %8 = vsyncpa [#allocation6], 0
    %9 = vsyncpa [#allocation4], 0
    // Predicated region
    $region2: #{tpu_custom_call.1} parent=1 // pred_check
      _
    $region3: #{tpu_custom_call.1} parent=1 // pred_check_branch
      %11 = sbr.rel (0) target = $region5
    $region4: #{tpu_custom_call.1} parent=1 // pred_region
      %s13 = ssub.s32 32, 32
      %14 = vsyncadd [#allocation3], %s13
      %s16 = sshll.u32 [#allocation2], 4
      %s17 = int_to_ptr.vmem [resolvable:$true] %s16
      %19 = dma.hbm_to_vmem [thread:$0]  %s0, 32, %s17, [#allocation3]
    $region5: #{tpu_custom_call.1} parent=1 // pred_fallthru
      _
    // Predicated region
    $region6: #{tpu_custom_call.1} parent=1 // pred_check
      _
    $region7: #{tpu_custom_call.1} parent=1 // pred_check_branch
      %21 = sbr.rel (0) target = $region9
    $region8: #{tpu_custom_call.1} parent=1 // pred_region
      %s23 = ssub.s32 256, 256
      %24 = vsyncadd [#allocation6], %s23
      %s25 = sshll.u32 [#allocation5], 4
      %s26 = int_to_ptr.vmem [resolvable:$true] %s25
      %31 = dma.hbm_to_vmem [thread:$0]  %s1, 256, %s26, [#allocation6], 32, 32, 2
    $region9: #{tpu_custom_call.1} parent=1 // pred_fallthru
      _
    // Predicated region
    $region10: #{tpu_custom_call.1} parent=1 // pred_check
      _
    $region11: #{tpu_custom_call.1} parent=1 // pred_check_branch
      %33 = sbr.rel (0) target = $region13
    $region12: #{tpu_custom_call.1} parent=1 // pred_region
      %34 = dma.done [#allocation3], 32
    $region13: #{tpu_custom_call.1} parent=1 // pred_fallthru
      _
    // Predicated region
    $region14: #{tpu_custom_call.1} parent=1 // pred_check
      _
    $region15: #{tpu_custom_call.1} parent=1 // pred_check_branch
      %36 = sbr.rel (0) target = $region17
    $region16: #{tpu_custom_call.1} parent=1 // pred_region
      %37 = dma.done [#allocation6], 256
    $region17: #{tpu_custom_call.1} parent=1 // pred_fallthru
      _
    %v38 = vld [vmem:[#allocation2] sm:$0x3]
    %v39 = vld [vmem:[#allocation5] sm:$0x3]
    %v40 = vld [vmem:[#allocation5 + $0x2] sm:$0x3]
    %v41 = vld [vmem:[#allocation5 + $0x4] sm:$0x3]
    %v42 = vld [vmem:[#allocation5 + $0x6] sm:$0x3]
    %v43 = vld [vmem:[#allocation5 + $0x8] sm:$0x3]
    %v44 = vld [vmem:[#allocation5 + $0xa] sm:$0x3]
    %v45 = vld [vmem:[#allocation5 + $0xc] sm:$0x3]
    %v46 = vld [vmem:[#allocation5 + $0xe] sm:$0x3]
    %v47 = vmul.f32 %v39, %v38
    %v48 = vmul.f32 %v40, %v38
    %v49 = vmul.f32 %v41, %v38
    %v50 = vmul.f32 %v42, %v38
    %v51 = vmul.f32 %v43, %v38
    %v52 = vmul.f32 %v44, %v38
    %v53 = vmul.f32 %v45, %v38
    %v54 = vmul.f32 %v46, %v38
    %vm55 = vcmask 254976
    %v56 = vsel %vm55, %v47, 0.0
    %57 = vadd.xlane.f32.xlu0 %v56
    %v58 = vpop.xlane.xlu0 %57
    %v59 = vsel %vm55, %v48, 0.0
    %60 = vadd.xlane.f32.xlu0 %v59
    %v61 = vpop.xlane.xlu0 %60
    %v62 = vsel %vm55, %v49, 0.0
    %63 = vadd.xlane.f32.xlu0 %v62
    %v64 = vpop.xlane.xlu0 %63
    %v65 = vsel %vm55, %v50, 0.0
    %66 = vadd.xlane.f32.xlu0 %v65
    %v67 = vpop.xlane.xlu0 %66
    %v68 = vsel %vm55, %v51, 0.0
    %69 = vadd.xlane.f32.xlu0 %v68
    %v70 = vpop.xlane.xlu0 %69
    %v71 = vsel %vm55, %v52, 0.0
    %72 = vadd.xlane.f32.xlu0 %v71
    %v73 = vpop.xlane.xlu0 %72
    %v74 = vsel %vm55, %v53, 0.0
    %75 = vadd.xlane.f32.xlu0 %v74
    %v76 = vpop.xlane.xlu0 %75
    %v77 = vsel %vm55, %v54, 0.0
    %78 = vadd.xlane.f32.xlu0 %v77
    %v79 = vpop.xlane.xlu0 %78
    %v88 = vlaneseq
    %v89 = vand.u32 %v88, 127
    %v90 = vlaneseq
    %v91 = vshrl.u32 %v90, 7
    %v92 = vsub.s32 %v89, %v91
    %v93 = vrot.slane %v58, %v92
    %v94 = vlaneseq
    %v95 = vshrl.u32 %v94, 7
    %v96 = vsub.s32 %v89, %v95
    %v97 = vrot.slane %v61, %v96
    %v98 = vlaneseq
    %v99 = vshrl.u32 %v98, 7
    %v100 = vsub.s32 %v89, %v99
    %v101 = vrot.slane %v64, %v100
    %v102 = vlaneseq
    %v103 = vshrl.u32 %v102, 7
    %v104 = vsub.s32 %v89, %v103
    %v105 = vrot.slane %v67, %v104
    %v106 = vlaneseq
    %v107 = vshrl.u32 %v106, 7
    %v108 = vsub.s32 %v89, %v107
    %v109 = vrot.slane %v70, %v108
    %v110 = vlaneseq
    %v111 = vshrl.u32 %v110, 7
    %v112 = vsub.s32 %v89, %v111
    %v113 = vrot.slane %v73, %v112
    %v114 = vlaneseq
    %v115 = vshrl.u32 %v114, 7
    %v116 = vsub.s32 %v89, %v115
    %v117 = vrot.slane %v76, %v116
    %v118 = vlaneseq
    %v119 = vshrl.u32 %v118, 7
    %v120 = vsub.s32 %v89, %v119
    %v121 = vrot.slane %v79, %v120
    %vm122 = vcmask 1041409
    %v123 = vsel %vm122, %v97, %v93
    %vm124 = vcmask 1042434
    %v125 = vsel %vm124, %v101, %v123
    %vm126 = vcmask 1043459
    %v127 = vsel %vm126, %v105, %v125
    %vm128 = vcmask 1044484
    %v129 = vsel %vm128, %v109, %v127
    %vm130 = vcmask 1045509
    %v131 = vsel %vm130, %v113, %v129
    %vm132 = vcmask 1046534
    %v133 = vsel %vm132, %v117, %v131
    %vm134 = vcmask 1047559
    %v135 = vsel %vm134, %v121, %v133
    %137 = vxpose.xlu0.b32.start [1/16] %v135, 128
    %138 = vxpose.xlu0.b32.cont [2/16] 0.0, 128
    %139 = vxpose.xlu0.b32.cont [3/16] 0.0, 128
    %140 = vxpose.xlu0.b32.cont [4/16] 0.0, 128
    %141 = vxpose.xlu0.b32.cont [5/16] 0.0, 128
    %142 = vxpose.xlu0.b32.cont [6/16] 0.0, 128
    %143 = vxpose.xlu0.b32.cont [7/16] 0.0, 128
    %144 = vxpose.xlu0.b32.cont [8/16] 0.0, 128
    %145 = vxpose.xlu0.b32.cont [9/16] 0.0, 128
    %146 = vxpose.xlu0.b32.cont [10/16] 0.0, 128
    %147 = vxpose.xlu0.b32.cont [11/16] 0.0, 128
    %148 = vxpose.xlu0.b32.cont [12/16] 0.0, 128
    %149 = vxpose.xlu0.b32.cont [13/16] 0.0, 128
    %150 = vxpose.xlu0.b32.cont [14/16] 0.0, 128
    %151 = vxpose.xlu0.b32.cont [15/16] 0.0, 128
    %152 = vxpose.xlu0.b32.end [16/16] 0.0, 128
    %v153 = vpop.trf.xlu0
    %v154 = vpop.trf.xlu0
    %v155 = vpop.trf.xlu0
    %v156 = vpop.trf.xlu0
    %v157 = vpop.trf.xlu0
    %v158 = vpop.trf.xlu0
    %v159 = vpop.trf.xlu0
    %v160 = vpop.trf.xlu0
    %v161 = vpop.trf.xlu0
    %v162 = vpop.trf.xlu0
    %v163 = vpop.trf.xlu0
    %v164 = vpop.trf.xlu0
    %v165 = vpop.trf.xlu0
    %v166 = vpop.trf.xlu0
    %v167 = vpop.trf.xlu0
    %v168 = vpop.trf.xlu0
    %vm169 = vcmask 58368
    %v170 = vsel %vm169, %v153, -inf
    %171 = vmax.xlane.f32.xlu0 %v170
    %v172 = vpop.xlane.xlu0 %171
    %v173 = vsub.f32 %v153, %v172
    %v174 = vmul.f32 %v173, 1.442695
    %v175 = vpow.pop %v174
    %v176 = vsel %vm169, %v175, 0.0
    %177 = vadd.xlane.f32.xlu0 %v176
    %v178 = vpop.xlane.xlu0 %177
    %v179 = vrcp.pop %v178
    %v180 = vmul.f32 %v175, %v179
    %181 = vst.msk [vmem:[#allocation7] sm:$0x3] %vm169, %v180
    // Predicated region
    $region18: #{tpu_custom_call.1} parent=1 // pred_check
      _
    $region19: #{tpu_custom_call.1} parent=1 // pred_check_branch
      %183 = sbr.rel (0) target = $region21
    $region20: #{tpu_custom_call.1} parent=1 // pred_region
      %s185 = ssub.s32 32, 32
      %186 = vsyncadd [#allocation4], %s185
      %s188 = sshll.u32 [#allocation7], 4
      %s189 = int_to_ptr.vmem [resolvable:$true] %s188
      %191 = dma.vmem_to_hbm [thread:$0]  %s189, 32, %s2, [#allocation4]
    $region21: #{tpu_custom_call.1} parent=1 // pred_fallthru
      _
    // Predicated region
    $region22: #{tpu_custom_call.1} parent=1 // pred_check
      _
    $region23: #{tpu_custom_call.1} parent=1 // pred_check_branch
      %193 = sbr.rel (0) target = $region25
    $region24: #{tpu_custom_call.1} parent=1 // pred_region
      %194 = dma.done [#allocation4], 32
    $region25: #{tpu_custom_call.1} parent=1 // pred_fallthru
      _
    %195 = vsyncpa [#allocation3], 1
    %196 = vsyncpa [#allocation6], 1
    %197 = vsyncpa [#allocation4], 1

</llo_original>
